<compile_context>
chip_gen: v5e
topology: v5e:2x2
jax: 0.10.0
libtpu: 0.0.40
codegen_flags: <defaults>
</compile_context>

<pallas_src>
import jax
import jax.numpy as jnp
from jax.experimental import pallas as pl
from jax.experimental.pallas import tpu as pltpu


# ----------------------------------------------------------------------------
# Pallas kernel 1: fully fused hourglass (channel-major, per (batch, tile))
# ----------------------------------------------------------------------------
def _hourglass_kernel(x_ref, w1_ref, b1_ref, w2_ref, b2_ref, w3_ref, b3_ref,
                      pool_ref, up_ref, o_ref):
    # x_ref: (1, C_in, TS) f32   -> cast to bf16 in VMEM for the MXU
    x = x_ref[0].astype(jnp.bfloat16)                                # (C_in, TS)

    # dense1 (1x1 conv): (hidden, C_in) @ (C_in, TS), f32 accumulate + ReLU
    f1 = jnp.dot(w1_ref[...], x, preferred_element_type=jnp.float32)
    f1 = jnp.maximum(f1 + b1_ref[...], 0.0)                          # (hidden, TS) f32
    f1_b = f1.astype(jnp.bfloat16)

    # 2x2 average pool as a matmul against the constant (TS, TS//4) pool matrix
    pooled = jnp.dot(f1_b, pool_ref[...],
                     preferred_element_type=jnp.float32).astype(jnp.bfloat16)

    # dense2 on the pooled grid + ReLU
    f2 = jnp.dot(w2_ref[...], pooled, preferred_element_type=jnp.float32)
    f2 = jnp.maximum(f2 + b2_ref[...], 0.0).astype(jnp.bfloat16)     # (hidden, TS//4)

    # nearest 2x2 upsample as a matmul, + skip connection (stays in VMEM)
    up = jnp.dot(f2, up_ref[...], preferred_element_type=jnp.float32)  # (hidden, TS)
    merged = (up + f1).astype(jnp.bfloat16)

    # dense3 -> unnormalized heatmaps, already channel-major (n_coords, TS)
    hm = jnp.dot(w3_ref[...], merged, preferred_element_type=jnp.float32)
    o_ref[0] = hm + b3_ref[...]


def hourglass_forward(x, params, *, n_spatial_tiles=1):
    """x: (B, C_in, H, W) NCHW f32 -> unnormalized heatmaps (B, n_coords, H*W) f32."""
    B, C, H, W = x.shape
    hidden = params["w1"].shape[1]
    n_coords = params["w3"].shape[1]
    S = H * W

    NT = n_spatial_tiles                       # raise for large H*W (VMEM tiling)
    assert S % NT == 0
    TS = S // NT
    TH = TS // W
    assert TH * W == TS and TH % 2 == 0 and W % 2 == 0, \
        "spatial tiles must cover an even number of full rows (2x2 pooling)"

    # channel-major, spatially flattened input (pure reshape, no transpose)
    x_cm = x.reshape(B, C, S)

    # bf16 weights (transposed for channel-major matmuls), f32 column biases
    w1t = params["w1"].T.astype(jnp.bfloat16)              # (hidden, C_in)
    w2t = params["w2"].T.astype(jnp.bfloat16)              # (hidden, hidden)
    w3t = params["w3"].T.astype(jnp.bfloat16)              # (n_coords, hidden)
    b1 = params["b1"].reshape(hidden, 1).astype(jnp.float32)
    b2 = params["b2"].reshape(hidden, 1).astype(jnp.float32)
    b3 = params["b3"].reshape(n_coords, 1).astype(jnp.float32)

    # constant pool / upsample matrices for one spatial tile (row-major s=h*W+w)
    hh = jnp.arange(TS) // W
    ww = jnp.arange(TS) % W
    sp = (hh // 2) * (W // 2) + (ww // 2)
    U = (sp[:, None] == jnp.arange(TS // 4)[None, :]).astype(jnp.bfloat16)
    pool_mat = (0.25 * U).astype(jnp.bfloat16)             # (TS, TS//4): avg-pool
    up_mat = U.T                                           # (TS//4, TS): nearest up

    return pl.pallas_call(
        _hourglass_kernel,
        out_shape=jax.ShapeDtypeStruct((B, n_coords, S), jnp.float32),
        grid=(B, NT),
        in_specs=[
            pl.BlockSpec((1, C, TS), lambda b, t: (b, 0, t)),
            pl.BlockSpec((hidden, C), lambda b, t: (0, 0)),
            pl.BlockSpec((hidden, 1), lambda b, t: (0, 0)),
            pl.BlockSpec((hidden, hidden), lambda b, t: (0, 0)),
            pl.BlockSpec((hidden, 1), lambda b, t: (0, 0)),
            pl.BlockSpec((n_coords, hidden), lambda b, t: (0, 0)),
            pl.BlockSpec((n_coords, 1), lambda b, t: (0, 0)),
            pl.BlockSpec((TS, TS // 4), lambda b, t: (0, 0)),
            pl.BlockSpec((TS // 4, TS), lambda b, t: (0, 0)),
        ],
        out_specs=pl.BlockSpec((1, n_coords, TS), lambda b, t: (b, 0, t)),
        compiler_params=pltpu.CompilerParams(
            dimension_semantics=("parallel", "parallel")),
    )(x_cm, w1t, b1, w2t, b2, w3t, b3, pool_mat, up_mat)


# ----------------------------------------------------------------------------
# Pallas kernel 2: fused DSNT regressor + heatmap_variance
#   softmax over H*W, then one MXU matmul p @ [x, y, x^2, y^2] gives all stats.
# ----------------------------------------------------------------------------
def _dsnt_kernel(hm_ref, tab_ref, norm_ref, stats_ref):
    hm = hm_ref[...]                                        # (tr, S) f32
    m = jnp.max(hm, axis=-1, keepdims=True)
    e = jnp.exp(hm - m)
    denom = jnp.sum(e, axis=-1, keepdims=True)
    p = e * pl.reciprocal(denom, approx=True)               # spatial softmax
    norm_ref[...] = p

    # all four expectations in a single MXU dot: (tr,S) @ (S,4)
    raw = jnp.dot(p, tab_ref[...], preferred_element_type=jnp.float32)
    mu = raw[:, 0:2]                                        # E[x], E[y]
    var = raw[:, 2:4] - mu * mu                             # E[x^2]-E[x]^2
    stats_ref[:, 0:2] = mu
    stats_ref[:, 2:4] = var


def dsnt_regressor(hm_flat, H, W):
    """hm_flat: (R, S) f32 with R=B*n_coords, S=H*W (NCHW-flat heatmaps)."""
    R, S = hm_flat.shape

    # DSNT normalized coordinate grid: pixel centers mapped into [-1, 1]
    jx = (2.0 * (jnp.arange(W, dtype=jnp.float32) + 0.5) / W) - 1.0
    jy = (2.0 * (jnp.arange(H, dtype=jnp.float32) + 0.5) / H) - 1.0
    xs = jnp.tile(jx, H)                                    # x of flat pixel h*W+w
    ys = jnp.repeat(jy, W)
    table = jnp.stack([xs, ys, xs * xs, ys * ys], axis=1)   # (S, 4) f32

    # tile over rows so large R pipelines / fits VMEM (v7x) and splits over TCs
    tr = R if R <= 256 else 256
    assert R % tr == 0

    norm, stats = pl.pallas_call(
        _dsnt_kernel,
        out_shape=(jax.ShapeDtypeStruct((R, S), jnp.float32),
                   jax.ShapeDtypeStruct((R, 4), jnp.float32)),
        grid=(R // tr,),
        in_specs=[pl.BlockSpec((tr, S), lambda i: (i, 0)),
                  pl.BlockSpec((S, 4), lambda i: (0, 0))],
        out_specs=(pl.BlockSpec((tr, S), lambda i: (i, 0)),
                   pl.BlockSpec((tr, 4), lambda i: (i, 0))),
        compiler_params=pltpu.CompilerParams(dimension_semantics=("parallel",)),
    )(hm_flat, table)

    return stats[:, 0:2], norm, stats[:, 2:4]


# ----------------------------------------------------------------------------
# Pipeline wrapper (mirrors HourglassPipeline.forward, single-output branch)
# ----------------------------------------------------------------------------
def hourglass_pipeline_forward(x, params):
    B, C, H, W = x.shape
    hm_flat = hourglass_forward(x, params)                  # (B, n_coords, H*W)
    n_coords = hm_flat.shape[1]

    unnormalized_heatmaps = hm_flat.reshape(B, n_coords, H, W)
    coords, norm, var = dsnt_regressor(hm_flat.reshape(B * n_coords, H * W), H, W)

    coords = coords.reshape(B, n_coords, 2)
    var = var.reshape(B, n_coords, 2)
    normalized_heatmaps = norm.reshape(B, n_coords, H, W)
    return coords, normalized_heatmaps, var, unnormalized_heatmaps


def init_params(key, c_in, hidden, n_coords):
    k1, k2, k3 = jax.random.split(key, 3)
    s = 0.1
    return {
        "w1": s * jax.random.normal(k1, (c_in, hidden), jnp.float32),
        "b1": jnp.zeros((hidden,), jnp.float32),
        "w2": s * jax.random.normal(k2, (hidden, hidden), jnp.float32),
        "b2": jnp.zeros((hidden,), jnp.float32),
        "w3": s * jax.random.normal(k3, (hidden, n_coords), jnp.float32),
        "b3": jnp.zeros((n_coords,), jnp.float32),
    }


# ----------------------------------------------------------------------------
# Pure-JAX reference (channels-last formulation, exact pooling / repeat upsample)
# ----------------------------------------------------------------------------
def _ref_forward(x, params):
    B, C, H, W = x.shape
    hid = params["w1"].shape[1]
    xf = jnp.transpose(x, (0, 2, 3, 1)).reshape(B * H * W, C)
    f1 = jax.nn.relu(xf @ params["w1"] + params["b1"])
    f1_img = f1.reshape(B, H, W, hid)
    pooled = f1_img.reshape(B, H // 2, 2, W // 2, 2, hid).mean(axis=(2, 4))
    f2 = jax.nn.relu(pooled.reshape(-1, hid) @ params["w2"] + params["b2"])
    f2_img = f2.reshape(B, H // 2, W // 2, hid)
    up = jnp.repeat(jnp.repeat(f2_img, 2, axis=1), 2, axis=2)
    merged = (up + f1_img).reshape(B * H * W, hid)
    hm = (merged @ params["w3"] + params["b3"])
    hm = hm.reshape(B, H, W, -1).transpose(0, 3, 1, 2)       # (B, nC, H, W)
    n_coords = hm.shape[1]

    hm_flat = hm.reshape(B * n_coords, H * W)
    p = jax.nn.softmax(hm_flat, axis=-1)
    jx = (2.0 * (jnp.arange(W, dtype=jnp.float32) + 0.5) / W) - 1.0
    jy = (2.0 * (jnp.arange(H, dtype=jnp.float32) + 0.5) / H) - 1.0
    xs = jnp.tile(jx, H)
    ys = jnp.repeat(jy, W)
    mu_x = (p * xs).sum(-1)
    mu_y = (p * ys).sum(-1)
    var_x = (p * xs * xs).sum(-1) - mu_x ** 2
    var_y = (p * ys * ys).sum(-1) - mu_y ** 2
    coords = jnp.stack([mu_x, mu_y], -1).reshape(B, n_coords, 2)
    var = jnp.stack([var_x, var_y], -1).reshape(B, n_coords, 2)
    return coords, p.reshape(B, n_coords, H, W), var, hm


if __name__ == "__main__":
    B, C_IN, H, W = 2, 4, 16, 16
    N_COORDS, HIDDEN = 4, 32

    key = jax.random.PRNGKey(0)
    kx, kp = jax.random.split(key)
    x = jax.random.normal(kx, (B, C_IN, H, W), jnp.float32)
    params = init_params(kp, C_IN, HIDDEN, N_COORDS)

    fwd = jax.jit(hourglass_pipeline_forward)
    coords, norm_hm, var, unnorm_hm = fwd(x, params)
    jax.block_until_ready((coords, norm_hm, var, unnorm_hm))

    assert coords.shape == (B, N_COORDS, 2)
    assert norm_hm.shape == (B, N_COORDS, H, W)
    assert var.shape == (B, N_COORDS, 2)
    assert unnorm_hm.shape == (B, N_COORDS, H, W)
    # normalized heatmaps sum to 1 over spatial dims (approx reciprocal -> loose atol)
    assert jnp.allclose(norm_hm.sum(axis=(-1, -2)), 1.0, atol=1e-2)

    # cross-check against the pure-JAX f32 reference (bf16 matmuls -> loose tol)
    r_coords, r_norm, r_var, r_unnorm = _ref_forward(x, params)
    assert jnp.allclose(unnorm_hm, r_unnorm, atol=3e-2)
    assert jnp.allclose(norm_hm, r_norm, atol=2e-3)
    assert jnp.allclose(coords, r_coords, atol=3e-2)
    assert jnp.allclose(var, r_var, atol=3e-2)

    print("KERNEL_OK")
</pallas_src>

<mosaic_0001>
module attributes {stable_mosaic.version = 11 : i64} {
  func.func @_hourglass_kernel(%arg0: i32, %arg1: i32, %arg2: memref<1x4x256xf32, #tpu.memory_space<vmem>>, %arg3: memref<32x4xbf16, #tpu.memory_space<vmem>>, %arg4: memref<32x1xf32, #tpu.memory_space<vmem>>, %arg5: memref<32x32xbf16, #tpu.memory_space<vmem>>, %arg6: memref<32x1xf32, #tpu.memory_space<vmem>>, %arg7: memref<4x32xbf16, #tpu.memory_space<vmem>>, %arg8: memref<4x1xf32, #tpu.memory_space<vmem>>, %arg9: memref<256x64xbf16, #tpu.memory_space<vmem>>, %arg10: memref<64x256xbf16, #tpu.memory_space<vmem>>, %arg11: memref<1x4x256xf32, #tpu.memory_space<vmem>>) attributes {dimension_semantics = [#tpu.dimension_semantics<parallel>, #tpu.dimension_semantics<parallel>], iteration_bounds = array<i64: 2, 1>, scalar_prefetch = 0 : i64, scratch_operands = 0 : i64, tpu.core_type = #tpu.core_type<tc>, window_params = [{transform_indices = @transform_0, window_bounds = array<i64: 1, 4, 256>}, {pipeline_mode = #tpu.pipeline_mode<synchronous>, transform_indices = @transform_1, window_bounds = array<i64: 32, 4>}, {pipeline_mode = #tpu.pipeline_mode<synchronous>, transform_indices = @transform_2, window_bounds = array<i64: 32, 1>}, {pipeline_mode = #tpu.pipeline_mode<synchronous>, transform_indices = @transform_3, window_bounds = array<i64: 32, 32>}, {pipeline_mode = #tpu.pipeline_mode<synchronous>, transform_indices = @transform_4, window_bounds = array<i64: 32, 1>}, {pipeline_mode = #tpu.pipeline_mode<synchronous>, transform_indices = @transform_5, window_bounds = array<i64: 4, 32>}, {pipeline_mode = #tpu.pipeline_mode<synchronous>, transform_indices = @transform_6, window_bounds = array<i64: 4, 1>}, {pipeline_mode = #tpu.pipeline_mode<synchronous>, transform_indices = @transform_7, window_bounds = array<i64: 256, 64>}, {pipeline_mode = #tpu.pipeline_mode<synchronous>, transform_indices = @transform_8, window_bounds = array<i64: 64, 256>}, {transform_indices = @transform_9, window_bounds = array<i64: 1, 4, 256>}]} {
    %c0 = arith.constant 0 : index
    %c0_0 = arith.constant 0 : index
    %c0_1 = arith.constant 0 : index
    %0 = vector.load %arg2[%c0, %c0_0, %c0_1] : memref<1x4x256xf32, #tpu.memory_space<vmem>>, vector<1x4x256xf32>
    %1 = vector.shape_cast %0 : vector<1x4x256xf32> to vector<4x256xf32>
    %2 = arith.truncf %1 : vector<4x256xf32> to vector<4x256xbf16>
    %c0_2 = arith.constant 0 : index
    %c0_3 = arith.constant 0 : index
    %3 = vector.load %arg3[%c0_2, %c0_3] : memref<32x4xbf16, #tpu.memory_space<vmem>>, vector<32x4xbf16>
    %cst = arith.constant dense<0.000000e+00> : vector<32x256xf32>
    %4 = tpu.matmul %3, %2, %cst {dimension_numbers = #tpu.dot_dimension_numbers<[1], [0], [0], [1], [0, 0, 1, 1], [], []>} : vector<32x4xbf16>, vector<4x256xbf16>, vector<32x256xf32> -> vector<32x256xf32>
    %c0_4 = arith.constant 0 : index
    %c0_5 = arith.constant 0 : index
    %5 = vector.load %arg4[%c0_4, %c0_5] : memref<32x1xf32, #tpu.memory_space<vmem>>, vector<32x1xf32>
    %6 = vector.broadcast %5 : vector<32x1xf32> to vector<32x256xf32>
    %7 = arith.addf %4, %6 : vector<32x256xf32>
    %cst_6 = arith.constant 0.000000e+00 : f32
    %8 = vector.broadcast %cst_6 : f32 to vector<32x256xf32>
    %9 = arith.maximumf %7, %8 : vector<32x256xf32>
    %10 = arith.truncf %9 : vector<32x256xf32> to vector<32x256xbf16>
    %c0_7 = arith.constant 0 : index
    %c0_8 = arith.constant 0 : index
    %11 = vector.load %arg9[%c0_7, %c0_8] : memref<256x64xbf16, #tpu.memory_space<vmem>>, vector<256x64xbf16>
    %cst_9 = arith.constant dense<0.000000e+00> : vector<32x64xf32>
    %12 = tpu.matmul %10, %11, %cst_9 {dimension_numbers = #tpu.dot_dimension_numbers<[1], [0], [0], [1], [0, 0, 1, 1], [], []>} : vector<32x256xbf16>, vector<256x64xbf16>, vector<32x64xf32> -> vector<32x64xf32>
    %13 = arith.truncf %12 : vector<32x64xf32> to vector<32x64xbf16>
    %c0_10 = arith.constant 0 : index
    %c0_11 = arith.constant 0 : index
    %14 = vector.load %arg5[%c0_10, %c0_11] : memref<32x32xbf16, #tpu.memory_space<vmem>>, vector<32x32xbf16>
    %cst_12 = arith.constant dense<0.000000e+00> : vector<32x64xf32>
    %15 = tpu.matmul %14, %13, %cst_12 {dimension_numbers = #tpu.dot_dimension_numbers<[1], [0], [0], [1], [0, 0, 1, 1], [], []>} : vector<32x32xbf16>, vector<32x64xbf16>, vector<32x64xf32> -> vector<32x64xf32>
    %c0_13 = arith.constant 0 : index
    %c0_14 = arith.constant 0 : index
    %16 = vector.load %arg6[%c0_13, %c0_14] : memref<32x1xf32, #tpu.memory_space<vmem>>, vector<32x1xf32>
    %17 = vector.broadcast %16 : vector<32x1xf32> to vector<32x64xf32>
    %18 = arith.addf %15, %17 : vector<32x64xf32>
    %cst_15 = arith.constant 0.000000e+00 : f32
    %19 = vector.broadcast %cst_15 : f32 to vector<32x64xf32>
    %20 = arith.maximumf %18, %19 : vector<32x64xf32>
    %21 = arith.truncf %20 : vector<32x64xf32> to vector<32x64xbf16>
    %c0_16 = arith.constant 0 : index
    %c0_17 = arith.constant 0 : index
    %22 = vector.load %arg10[%c0_16, %c0_17] : memref<64x256xbf16, #tpu.memory_space<vmem>>, vector<64x256xbf16>
    %cst_18 = arith.constant dense<0.000000e+00> : vector<32x256xf32>
    %23 = tpu.matmul %21, %22, %cst_18 {dimension_numbers = #tpu.dot_dimension_numbers<[1], [0], [0], [1], [0, 0, 1, 1], [], []>} : vector<32x64xbf16>, vector<64x256xbf16>, vector<32x256xf32> -> vector<32x256xf32>
    %24 = arith.addf %23, %9 : vector<32x256xf32>
    %25 = arith.truncf %24 : vector<32x256xf32> to vector<32x256xbf16>
    %c0_19 = arith.constant 0 : index
    %c0_20 = arith.constant 0 : index
    %26 = vector.load %arg7[%c0_19, %c0_20] : memref<4x32xbf16, #tpu.memory_space<vmem>>, vector<4x32xbf16>
    %cst_21 = arith.constant dense<0.000000e+00> : vector<4x256xf32>
    %27 = tpu.matmul %26, %25, %cst_21 {dimension_numbers = #tpu.dot_dimension_numbers<[1], [0], [0], [1], [0, 0, 1, 1], [], []>} : vector<4x32xbf16>, vector<32x256xbf16>, vector<4x256xf32> -> vector<4x256xf32>
    %c0_22 = arith.constant 0 : index
    %c0_23 = arith.constant 0 : index
    %28 = vector.load %arg8[%c0_22, %c0_23] : memref<4x1xf32, #tpu.memory_space<vmem>>, vector<4x1xf32>
    %29 = vector.broadcast %28 : vector<4x1xf32> to vector<4x256xf32>
    %30 = arith.addf %27, %29 : vector<4x256xf32>
    %c0_24 = arith.constant 0 : index
    %c0_25 = arith.constant 0 : index
    %c0_26 = arith.constant 0 : index
    %31 = vector.load %arg11[%c0_24, %c0_25, %c0_26] : memref<1x4x256xf32, #tpu.memory_space<vmem>>, vector<1x4x256xf32>
    %32 = vector.shape_cast %31 : vector<1x4x256xf32> to vector<4x256xf32>
    %33 = vector.shape_cast %30 : vector<4x256xf32> to vector<1x4x256xf32>
    tpu.vector_store %arg11[%c0_24, %c0_25, %c0_26], %33 {strides = array<i32>} : memref<1x4x256xf32, #tpu.memory_space<vmem>>, vector<1x4x256xf32>,
    return
  }
  func.func @transform_0(%arg0: i32, %arg1: i32) -> (i32, i32, i32) {
    %c0_i32 = arith.constant 0 : i32
    %c0_i32_0 = arith.constant 0 : i32
    return %arg0, %c0_i32, %arg1 : i32, i32, i32
  }
  func.func @transform_1(%arg0: i32, %arg1: i32) -> (i32, i32) {
    %c0_i32 = arith.constant 0 : i32
    %c0_i32_0 = arith.constant 0 : i32
    %c0_i32_1 = arith.constant 0 : i32
    return %c0_i32, %c0_i32_0 : i32, i32
  }
  func.func @transform_2(%arg0: i32, %arg1: i32) -> (i32, i32) {
    %c0_i32 = arith.constant 0 : i32
    %c0_i32_0 = arith.constant 0 : i32
    %c0_i32_1 = arith.constant 0 : i32
    return %c0_i32, %c0_i32_0 : i32, i32
  }
  func.func @transform_3(%arg0: i32, %arg1: i32) -> (i32, i32) {
    %c0_i32 = arith.constant 0 : i32
    %c0_i32_0 = arith.constant 0 : i32
    %c0_i32_1 = arith.constant 0 : i32
    return %c0_i32, %c0_i32_0 : i32, i32
  }
  func.func @transform_4(%arg0: i32, %arg1: i32) -> (i32, i32) {
    %c0_i32 = arith.constant 0 : i32
    %c0_i32_0 = arith.constant 0 : i32
    %c0_i32_1 = arith.constant 0 : i32
    return %c0_i32, %c0_i32_0 : i32, i32
  }
  func.func @transform_5(%arg0: i32, %arg1: i32) -> (i32, i32) {
    %c0_i32 = arith.constant 0 : i32
    %c0_i32_0 = arith.constant 0 : i32
    %c0_i32_1 = arith.constant 0 : i32
    return %c0_i32, %c0_i32_0 : i32, i32
  }
  func.func @transform_6(%arg0: i32, %arg1: i32) -> (i32, i32) {
    %c0_i32 = arith.constant 0 : i32
    %c0_i32_0 = arith.constant 0 : i32
    %c0_i32_1 = arith.constant 0 : i32
    return %c0_i32, %c0_i32_0 : i32, i32
  }
  func.func @transform_7(%arg0: i32, %arg1: i32) -> (i32, i32) {
    %c0_i32 = arith.constant 0 : i32
    %c0_i32_0 = arith.constant 0 : i32
    %c0_i32_1 = arith.constant 0 : i32
    return %c0_i32, %c0_i32_0 : i32, i32
  }
  func.func @transform_8(%arg0: i32, %arg1: i32) -> (i32, i32) {
    %c0_i32 = arith.constant 0 : i32
    %c0_i32_0 = arith.constant 0 : i32
    %c0_i32_1 = arith.constant 0 : i32
    return %c0_i32, %c0_i32_0 : i32, i32
  }
  func.func @transform_9(%arg0: i32, %arg1: i32) -> (i32, i32, i32) {
    %c0_i32 = arith.constant 0 : i32
    %c0_i32_0 = arith.constant 0 : i32
    return %arg0, %c0_i32, %arg1 : i32, i32, i32
  }
}

module attributes {stable_mosaic.version = 11 : i64} {
  func.func @_dsnt_kernel(%arg0: i32, %arg1: memref<8x256xf32, #tpu.memory_space<vmem>>, %arg2: memref<256x4xf32, #tpu.memory_space<vmem>>, %arg3: memref<8x256xf32, #tpu.memory_space<vmem>>, %arg4: memref<8x4xf32, #tpu.memory_space<vmem>>) attributes {dimension_semantics = [#tpu.dimension_semantics<parallel>], iteration_bounds = array<i64: 1>, scalar_prefetch = 0 : i64, scratch_operands = 0 : i64, tpu.core_type = #tpu.core_type<tc>, window_params = [{transform_indices = @transform_0, window_bounds = array<i64: 8, 256>}, {pipeline_mode = #tpu.pipeline_mode<synchronous>, transform_indices = @transform_1, window_bounds = array<i64: 256, 4>}, {transform_indices = @transform_2, window_bounds = array<i64: 8, 256>}, {transform_indices = @transform_3, window_bounds = array<i64: 8, 4>}]} {
    %c0 = arith.constant 0 : index
    %c0_0 = arith.constant 0 : index
    %0 = vector.load %arg1[%c0, %c0_0] : memref<8x256xf32, #tpu.memory_space<vmem>>, vector<8x256xf32>
    %cst = arith.constant dense<0xFF800000> : vector<8xf32>
    %1 = vector.multi_reduction <maximumf>, %0, %cst [1] : vector<8x256xf32> to vector<8xf32>
    %2 = vector.shape_cast %1 : vector<8xf32> to vector<8x1xf32>
    %3 = vector.broadcast %2 : vector<8x1xf32> to vector<8x256xf32>
    %4 = arith.subf %0, %3 : vector<8x256xf32>
    %5 = math.exp %4 : vector<8x256xf32>
    %cst_1 = arith.constant dense<0.000000e+00> : vector<8xf32>
    %6 = vector.multi_reduction <add>, %5, %cst_1 [1] : vector<8x256xf32> to vector<8xf32>
    %7 = vector.shape_cast %6 : vector<8xf32> to vector<8x1xf32>
    %8 = tpu.reciprocal %7 {approx = true} : vector<8x1xf32> -> vector<8x1xf32>
    %9 = vector.broadcast %8 : vector<8x1xf32> to vector<8x256xf32>
    %10 = arith.mulf %5, %9 : vector<8x256xf32>
    %c0_2 = arith.constant 0 : index
    %c0_3 = arith.constant 0 : index
    %11 = vector.load %arg3[%c0_2, %c0_3] : memref<8x256xf32, #tpu.memory_space<vmem>>, vector<8x256xf32>
    tpu.vector_store %arg3[%c0_2, %c0_3], %10 {strides = array<i32>} : memref<8x256xf32, #tpu.memory_space<vmem>>, vector<8x256xf32>,
    %c0_4 = arith.constant 0 : index
    %c0_5 = arith.constant 0 : index
    %12 = vector.load %arg2[%c0_4, %c0_5] : memref<256x4xf32, #tpu.memory_space<vmem>>, vector<256x4xf32>
    %cst_6 = arith.constant dense<0.000000e+00> : vector<8x4xf32>
    %13 = tpu.matmul %10, %12, %cst_6 {dimension_numbers = #tpu.dot_dimension_numbers<[1], [0], [0], [1], [0, 0, 1, 1], [], []>} : vector<8x256xf32>, vector<256x4xf32>, vector<8x4xf32> -> vector<8x4xf32>
    %14 = vector.extract_strided_slice %13 {offsets = [0, 0], sizes = [8, 2], strides = [1, 1]} : vector<8x4xf32> to vector<8x2xf32>
    %15 = vector.extract_strided_slice %13 {offsets = [0, 2], sizes = [8, 2], strides = [1, 1]} : vector<8x4xf32> to vector<8x2xf32>
    %16 = arith.mulf %14, %14 : vector<8x2xf32>
    %17 = arith.subf %15, %16 : vector<8x2xf32>
    %c0_7 = arith.constant 0 : index
    %c0_8 = arith.constant 0 : index
    %18 = vector.load %arg4[%c0_7, %c0_8] : memref<8x4xf32, #tpu.memory_space<vmem>>, vector<8x2xf32>
    tpu.vector_store %arg4[%c0_7, %c0_8], %14 {strides = array<i32>} : memref<8x4xf32, #tpu.memory_space<vmem>>, vector<8x2xf32>,
    %c0_9 = arith.constant 0 : index
    %c2 = arith.constant 2 : index
    %19 = vector.load %arg4[%c0_9, %c2] : memref<8x4xf32, #tpu.memory_space<vmem>>, vector<8x2xf32>
    tpu.vector_store %arg4[%c0_9, %c2], %17 {strides = array<i32>} : memref<8x4xf32, #tpu.memory_space<vmem>>, vector<8x2xf32>,
    return
  }
  func.func @transform_0(%arg0: i32) -> (i32, i32) {
    %c0_i32 = arith.constant 0 : i32
    %c0_i32_0 = arith.constant 0 : i32
    return %arg0, %c0_i32 : i32, i32
  }
  func.func @transform_1(%arg0: i32) -> (i32, i32) {
    %c0_i32 = arith.constant 0 : i32
    %c0_i32_0 = arith.constant 0 : i32
    %c0_i32_1 = arith.constant 0 : i32
    return %c0_i32, %c0_i32_0 : i32, i32
  }
  func.func @transform_2(%arg0: i32) -> (i32, i32) {
    %c0_i32 = arith.constant 0 : i32
    %c0_i32_0 = arith.constant 0 : i32
    return %arg0, %c0_i32 : i32, i32
  }
  func.func @transform_3(%arg0: i32) -> (i32, i32) {
    %c0_i32 = arith.constant 0 : i32
    %c0_i32_0 = arith.constant 0 : i32
    return %arg0, %c0_i32 : i32, i32
  }
}

</mosaic_0001>

<llo_original>
// kernel: mul.2
$region0: #{mul.2}
  #allocation0 [shape = 's32[1]{0}', space=sflag, size = 0x4, scoped, tag = 'scoped memory for mul.2']
  %s0 = inlined_call_operand.vmem [shape: f32[256,1], index: 0, kind: input, shape index: {}, may-alias: {0,1}]
  %s1 = inlined_call_operand.vmem [shape: f32[256,1], index: 1, kind: input, shape index: {}, may-alias: {0,1}]
  %s2 = inlined_call_operand.vmem [shape: f32[256,1], index: 2, kind: output, shape index: {}]
  %v3 = vld [vmem:[%s0] sm:$0x1]
  %v4 = vld [vmem:[%s1] sm:$0x1]
  %5 = xla_tuple %v3, %v4
  %6 = xla_tuple %5
  %v7 = vmul.f32 %v3, %v4
  %8 = xla_tuple %v7
  %9 = vst [vmem:[%s2] sm:$0x1] %v7
  %s10 = scalar_lea.vmem %s0, 1
  %v11 = vld [vmem:[%s10] sm:$0x1]
  %s12 = scalar_lea.vmem %s1, 1
  %v13 = vld [vmem:[%s12] sm:$0x1]
  %14 = xla_tuple %v11, %v13
  %15 = xla_tuple %14
  %v16 = vmul.f32 %v11, %v13
  %17 = xla_tuple %v16
  %s18 = scalar_lea.vmem %s2, 1
  %19 = vst [vmem:[%s18] sm:$0x1] %v16

// kernel: tile.9
$region0: #{tile.9}
  #allocation0 [shape = 's32[1]{0}', space=sflag, size = 0x4, scoped, tag = 'scoped memory for tile.9']
  %s0 = inlined_call_operand.vmem [shape: f32[16], index: 0, kind: input, shape index: {}]
  %s1 = inlined_call_operand.vmem [shape: f32[16,16], index: 1, kind: output, shape index: {}]
  // Predicated region
  $region2: #{tile.9} parent=0 // pred_check
    _
  $region3: #{tile.9} parent=0 // pred_check_branch
    %3 = sbr.rel (0) target = $region5
  $region4: #{tile.9} parent=0 // pred_region
    _
  $region5: #{tile.9} parent=0 // pred_fallthru
    _
  %v4 = vld [vmem:[%s0] ss:$0 sm:$0xff]
  %5 = vst [vmem:[%s1] sm:$0xff] %v4
  %s6 = scalar_lea.vmem %s1, 8
  %7 = vst [vmem:[%s6] sm:$0xff] %v4

// kernel: hourglass_pipeline_forward.3
$region0: #{hourglass_pipeline_forward.3}
  #allocation0 [shape = 'u32[]', space=smem, size = 0x4, offset = 0x4, fixed_abs, tag = 'smem constant byte address 0x4 - core index']
  #allocation1 [shape = 'u32[72,128]{1,0:T(1,128)}', space=vmem, size = 0x9000, scoped, tag = 'internal scratch']
  %s0 = inlined_call_operand.vmem [shape: f32[8,256], index: 0, kind: input, shape index: {}]
  %s1 = inlined_call_operand.vmem [shape: f32[256,4], index: 1, kind: input, shape index: {}]
  %s2 = inlined_call_operand.vmem [shape: f32[8,256], index: 2, kind: output, shape index: {0}]
  %s3 = inlined_call_operand.vmem [shape: f32[8,4], index: 3, kind: output, shape index: {1}]
  %4 = xla_tuple %s2, %s3
  %s5 = sld [smem:[#allocation0]]
  $region26: #{hourglass_pipeline_forward.3} parent=0
    _
  %s7 = ssub.s32 1, %s5
  %s8 = scalar_select 0, %s7, %s5
  // Predicated region
  $region2: #{hourglass_pipeline_forward.3} parent=0 // pred_check
    _
  $region3: #{hourglass_pipeline_forward.3} parent=0 // pred_check_branch
    %10 = sbr.rel (0) target = $region5
  $region4: #{hourglass_pipeline_forward.3} parent=0 // pred_region
    _
  $region5: #{hourglass_pipeline_forward.3} parent=0 // pred_fallthru
    _
  // Predicated region
  $region6: #{hourglass_pipeline_forward.3} parent=0 // pred_check
    _
  $region7: #{hourglass_pipeline_forward.3} parent=0 // pred_check_branch
    %12 = sbr.rel (0) target = $region9
  $region8: #{hourglass_pipeline_forward.3} parent=0 // pred_region
    _
  $region9: #{hourglass_pipeline_forward.3} parent=0 // pred_fallthru
    _
  %v13 = vld [vmem:[%s0] sm:$0xff]
  %v14 = vld [vmem:[%s0 + $0x8] sm:$0xff]
  %v15 = vmax.f32 %v13, %v14
  %16 = vmax.xlane.f32.xlu0 %v15
  %v17 = vpop.xlane.xlu0 %16
  %v18 = vsub.f32 %v13, %v17
  %v19 = vsub.f32 %v14, %v17
  %v20 = vmul.f32 %v18, 1.442695
  %v21 = vpow.pop %v20
  %v22 = vmul.f32 %v19, 1.442695
  %v23 = vpow.pop %v22
  %v24 = vadd.f32 %v21, %v23
  %25 = vadd.xlane.f32.xlu0 %v24
  %v26 = vpop.xlane.xlu0 %25
  %v27 = vrcp.pop %v26
  %v28 = vmul.f32 %v21, %v27
  %v29 = vmul.f32 %v23, %v27
  %30 = vst [vmem:[%s2] sm:$0xff] %v28
  %31 = vst [vmem:[%s2 + $0x8] sm:$0xff] %v29
  %v32 = vld [vmem:[%s1] sm:$0xff]
  %v33 = vld [vmem:[%s1 + $0x8] sm:$0xff]
  %v34 = vld [vmem:[%s1 + $0x10] sm:$0xff]
  %v35 = vld [vmem:[%s1 + $0x18] sm:$0xff]
  %v36 = vld [vmem:[%s1 + $0x20] sm:$0xff]
  %v37 = vld [vmem:[%s1 + $0x28] sm:$0xff]
  %v38 = vld [vmem:[%s1 + $0x30] sm:$0xff]
  %v39 = vld [vmem:[%s1 + $0x38] sm:$0xff]
  %v40 = vld [vmem:[%s1 + $0x40] sm:$0xff]
  %v41 = vld [vmem:[%s1 + $0x48] sm:$0xff]
  %v42 = vld [vmem:[%s1 + $0x50] sm:$0xff]
  %v43 = vld [vmem:[%s1 + $0x58] sm:$0xff]
  %v44 = vld [vmem:[%s1 + $0x60] sm:$0xff]
  %v45 = vld [vmem:[%s1 + $0x68] sm:$0xff]
  %v46 = vld [vmem:[%s1 + $0x70] sm:$0xff]
  %v47 = vld [vmem:[%s1 + $0x78] sm:$0xff]
  %v48 = vld [vmem:[%s1 + $0x80] sm:$0xff]
  %v49 = vld [vmem:[%s1 + $0x88] sm:$0xff]
  %v50 = vld [vmem:[%s1 + $0x90] sm:$0xff]
  %v51 = vld [vmem:[%s1 + $0x98] sm:$0xff]
  %v52 = vld [vmem:[%s1 + $0xa0] sm:$0xff]
  %v53 = vld [vmem:[%s1 + $0xa8] sm:$0xff]
  %v54 = vld [vmem:[%s1 + $0xb0] sm:$0xff]
  %v55 = vld [vmem:[%s1 + $0xb8] sm:$0xff]
  %v56 = vld [vmem:[%s1 + $0xc0] sm:$0xff]
  %v57 = vld [vmem:[%s1 + $0xc8] sm:$0xff]
  %v58 = vld [vmem:[%s1 + $0xd0] sm:$0xff]
  %v59 = vld [vmem:[%s1 + $0xd8] sm:$0xff]
  %v60 = vld [vmem:[%s1 + $0xe0] sm:$0xff]
  %v61 = vld [vmem:[%s1 + $0xe8] sm:$0xff]
  %v62 = vld [vmem:[%s1 + $0xf0] sm:$0xff]
  %v63 = vld [vmem:[%s1 + $0xf8] sm:$0xff]
  %64 = vmatpush.msra.mxu0 %v47
  %65 = vmatpush.msra.mxu0 %v46
  %66 = vmatpush.msra.mxu0 %v45
  %67 = vmatpush.msra.mxu0 %v44
  %68 = vmatpush.msra.mxu0 %v43
  %69 = vmatpush.msra.mxu0 %v42
  %70 = vmatpush.msra.mxu0 %v41
  %71 = vmatpush.msra.mxu0 %v40
  %72 = vmatpush.msra.mxu0 %v39
  %73 = vmatpush.msra.mxu0 %v38
  %74 = vmatpush.msra.mxu0 %v37
  %75 = vmatpush.msra.mxu0 %v36
  %76 = vmatpush.msra.mxu0 %v35
  %77 = vmatpush.msra.mxu0 %v34
  %78 = vmatpush.msra.mxu0 %v33
  %79 = vmatpush.msra.mxu0 %v32
  %80 = vmatmul.f32.gmra.mxu0 %v28
  %v81 = vpop.f32.mrf.mxu0
  %v82 = vadd.f32 0.0, %v81
  %83 = vdwg.mxu0
  %84 = vmatpush.msra.mxu0 %v63
  %85 = vmatpush.msra.mxu0 %v62
  %86 = vmatpush.msra.mxu0 %v61
  %87 = vmatpush.msra.mxu0 %v60
  %88 = vmatpush.msra.mxu0 %v59
  %89 = vmatpush.msra.mxu0 %v58
  %90 = vmatpush.msra.mxu0 %v57
  %91 = vmatpush.msra.mxu0 %v56
  %92 = vmatpush.msra.mxu0 %v55
  %93 = vmatpush.msra.mxu0 %v54
  %94 = vmatpush.msra.mxu0 %v53
  %95 = vmatpush.msra.mxu0 %v52
  %96 = vmatpush.msra.mxu0 %v51
  %97 = vmatpush.msra.mxu0 %v50
  %98 = vmatpush.msra.mxu0 %v49
  %99 = vmatpush.msra.mxu0 %v48
  %100 = vmatmul.f32.gmra.mxu0 %v29
  %v101 = vpop.f32.mrf.mxu0
  %v102 = vadd.f32 %v82, %v101
  %103 = vdwg.mxu0
  %v104 = vmul.f32 %v102, %v102
  %106 = vrot.lane.b32.xlu0 %v104, 2
  %v107 = vpop.permute.xlu0 %106
  %v109 = vsub.f32 %v102, %v107
  %vm110 = vcmask 15360
  %111 = vst.msk [vmem:[%s3] sm:$0xff] %vm110, %v102
  %vm112 = vcmask 31760
  %113 = vst.msk [vmem:[%s3] sm:$0xff] %vm112, %v109
  // Predicated region
  $region10: #{hourglass_pipeline_forward.3} parent=0 // pred_check
    _
  $region11: #{hourglass_pipeline_forward.3} parent=0 // pred_check_branch
    %115 = sbr.rel (0) target = $region13
  $region12: #{hourglass_pipeline_forward.3} parent=0 // pred_region
    _
  $region13: #{hourglass_pipeline_forward.3} parent=0 // pred_fallthru
    _
  // Predicated region
  $region14: #{hourglass_pipeline_forward.3} parent=0 // pred_check
    _
  $region15: #{hourglass_pipeline_forward.3} parent=0 // pred_check_branch
    %117 = sbr.rel (0) target = $region17
  $region16: #{hourglass_pipeline_forward.3} parent=0 // pred_region
    _
  $region17: #{hourglass_pipeline_forward.3} parent=0 // pred_fallthru
    _
  // Predicated region
  $region18: #{hourglass_pipeline_forward.3} parent=0 // pred_check
    _
  $region19: #{hourglass_pipeline_forward.3} parent=0 // pred_check_branch
    %119 = sbr.rel (0) target = $region21
  $region20: #{hourglass_pipeline_forward.3} parent=0 // pred_region
    _
  $region21: #{hourglass_pipeline_forward.3} parent=0 // pred_fallthru
    _
  // Predicated region
  $region22: #{hourglass_pipeline_forward.3} parent=0 // pred_check
    _
  $region23: #{hourglass_pipeline_forward.3} parent=0 // pred_check_branch
    %121 = sbr.rel (0) target = $region25
  $region24: #{hourglass_pipeline_forward.3} parent=0 // pred_region
    _
  $region25: #{hourglass_pipeline_forward.3} parent=0 // pred_fallthru
    _

// kernel: hourglass_pipeline_forward.2
$region0: #{hourglass_pipeline_forward.2}
  #allocation0 [shape = 'u32[]', space=smem, size = 0x4, offset = 0x4, fixed_abs, tag = 'smem constant byte address 0x4 - core index']
  #allocation1 [shape = 'u32[72,128]{1,0:T(1,128)}', space=vmem, size = 0x9000, scoped, tag = 'internal scratch']
  %s0 = inlined_call_operand.vmem [shape: f32[2,4,256], index: 0, kind: input, shape index: {}]
  %s1 = inlined_call_operand.vmem [shape: bf16[32,4], index: 1, kind: input, shape index: {}]
  %s2 = inlined_call_operand.vmem [shape: f32[32,1], index: 2, kind: input, shape index: {}]
  %s3 = inlined_call_operand.vmem [shape: bf16[32,32], index: 3, kind: input, shape index: {}]
  %s4 = inlined_call_operand.vmem [shape: f32[32,1], index: 4, kind: input, shape index: {}]
  %s5 = inlined_call_operand.vmem [shape: bf16[4,32], index: 5, kind: input, shape index: {}]
  %s6 = inlined_call_operand.vmem [shape: f32[4,1], index: 6, kind: input, shape index: {}]
  %s7 = inlined_call_operand.vmem [shape: bf16[256,64], index: 7, kind: input, shape index: {}]
  %s8 = inlined_call_operand.vmem [shape: bf16[64,256], index: 8, kind: input, shape index: {}]
  %s9 = inlined_call_operand.vmem [shape: f32[2,4,256], index: 9, kind: output, shape index: {}]
  %s10 = sld [smem:[#allocation0]]
  $region69: #{hourglass_pipeline_forward.2} parent=0
    _
  %s12 = ssub.s32 1, %s10
  %s13 = scalar_select 0, %s12, %s10
  loop: start=0, step=1, limit=4
  $region2: #{hourglass_pipeline_forward.2} parent=0 // loop_pre_header
    _
  $region3: #{hourglass_pipeline_forward.2} parent=0 // loop_header
    %s15 = sphi 0, %s19
    %p16 = scmp.ge.s32.totalorder %s15, 4
    %s22 = sphi 0, %s34
    %s23 = sphi 0, %s30
    %s24 = sphi 0, %s22
    %s25 = sphi 0, %s23
    %s26 = sphi 0, %s24
    %s27 = sphi 0, %s25
    %s39 = sphi 0, %s41
    %s42 = sphi 0, %s39
    %s43 = sphi 0, %s42
    %s59 = sphi 0, %s43
    %s63 = sphi 0, %s63
    %s65 = sphi 0, %s63
    %s66 = sphi 0, %s65
    %s80 = sphi 0, %s66
    %s84 = sphi 0, %s84
    %s86 = sphi 0, %s84
    %s87 = sphi 0, %s86
    %s101 = sphi 0, %s87
    %s105 = sphi 0, %s105
    %s107 = sphi 0, %s105
    %s108 = sphi 0, %s107
    %s122 = sphi 0, %s108
    %s126 = sphi 0, %s126
    %s128 = sphi 0, %s126
    %s129 = sphi 0, %s128
    %s143 = sphi 0, %s129
    %s147 = sphi 0, %s147
    %s149 = sphi 0, %s147
    %s150 = sphi 0, %s149
    %s164 = sphi 0, %s150
    %s168 = sphi 0, %s168
    %s170 = sphi 0, %s168
    %s171 = sphi 0, %s170
    %s185 = sphi 0, %s171
    %s189 = sphi 0, %s189
    %s191 = sphi 0, %s189
    %s192 = sphi 0, %s191
    %s206 = sphi 0, %s192
    %s210 = sphi 0, %s210
    %s212 = sphi 0, %s210
    %s213 = sphi 0, %s212
    %s227 = sphi 0, %s213
    %s235 = sphi 0, %s237
    %s238 = sphi 0, %s235
    %s239 = sphi 0, %s238
    %s255 = sphi 0, %s239
  $region4: #{hourglass_pipeline_forward.2} parent=0 // loop_header_branch
    %18 = sbr.rel (%p16) target = $region8
  $region5: #{hourglass_pipeline_forward.2} parent=0 // loop_body
    %s20 = ssub.s32 %s15, 1
    %s21 = ssub.s32 %s15, 2
    %s28 = sadd.s32 1, %s23
    %p29 = scmp.ge.s32.totalorder %s28, 1
    %s30 = scalar_select %p29, 0, %s28
    %s31 = sadd.s32 1, %s22
    %s32 = scalar_select %p29, %s31, %s22
    %p33 = scmp.ge.s32.totalorder %s32, 2
    %s34 = scalar_select %p33, 0, %s32
    %s35 = ssub.s32 %s22, %s34
    %s36 = ssub.s32 %s23, %s30
    %s37 = sor.u32 %s35, %s36
    %p38 = scmp.eq.s32.totalorder %s37, 0
    %s40 = sadd.s32 %s39, 1
    %s41 = scalar_select %p38, %s39, %s40
    %p44 = pneg %p38
    %p45 = scmp.eq.s32.totalorder %s15, 1
    %p46 = por %p44, %p45
    %p47 = scmp.ne.s32.totalorder %s39, %s42
    %p48 = scmp.eq.s32.totalorder %s15, 0
    %p49 = por %p47, %p48
    %p50 = scmp.ne.s32.totalorder %s39, %s42
    %p51 = scmp.eq.s32.totalorder %s20, 1
    %p52 = por %p50, %p51
    %p53 = scmp.ne.s32.totalorder %s42, %s43
    %p54 = scmp.eq.s32.totalorder %s20, 0
    %p55 = por %p53, %p54
    %p56 = scmp.ne.s32.totalorder %s42, %s43
    %p57 = scmp.eq.s32.totalorder %s21, 1
    %p58 = por %p56, %p57
    %p60 = scmp.ne.s32.totalorder %s43, %s59
    %p61 = scmp.eq.s32.totalorder %s21, 0
    %p62 = por %p60, %p61
    %s64 = sadd.s32 %s63, 1
    %p67 = scmp.eq.s32.totalorder %s15, 1
    %p68 = scmp.ne.s32.totalorder %s63, %s65
    %p69 = scmp.eq.s32.totalorder %s15, 0
    %p70 = por %p68, %p69
    %p71 = scmp.ne.s32.totalorder %s63, %s65
    %p72 = scmp.eq.s32.totalorder %s20, 1
    %p73 = por %p71, %p72
    %p74 = scmp.ne.s32.totalorder %s65, %s66
    %p75 = scmp.eq.s32.totalorder %s20, 0
    %p76 = por %p74, %p75
    %p77 = scmp.ne.s32.totalorder %s65, %s66
    %p78 = scmp.eq.s32.totalorder %s21, 1
    %p79 = por %p77, %p78
    %p81 = scmp.ne.s32.totalorder %s66, %s80
    %p82 = scmp.eq.s32.totalorder %s21, 0
    %p83 = por %p81, %p82
    %s85 = sadd.s32 %s84, 1
    %p88 = scmp.eq.s32.totalorder %s15, 1
    %p89 = scmp.ne.s32.totalorder %s84, %s86
    %p90 = scmp.eq.s32.totalorder %s15, 0
    %p91 = por %p89, %p90
    %p92 = scmp.ne.s32.totalorder %s84, %s86
    %p93 = scmp.eq.s32.totalorder %s20, 1
    %p94 = por %p92, %p93
    %p95 = scmp.ne.s32.totalorder %s86, %s87
    %p96 = scmp.eq.s32.totalorder %s20, 0
    %p97 = por %p95, %p96
    %p98 = scmp.ne.s32.totalorder %s86, %s87
    %p99 = scmp.eq.s32.totalorder %s21, 1
    %p100 = por %p98, %p99
    %p102 = scmp.ne.s32.totalorder %s87, %s101
    %p103 = scmp.eq.s32.totalorder %s21, 0
    %p104 = por %p102, %p103
    %s106 = sadd.s32 %s105, 1
    %p109 = scmp.eq.s32.totalorder %s15, 1
    %p110 = scmp.ne.s32.totalorder %s105, %s107
    %p111 = scmp.eq.s32.totalorder %s15, 0
    %p112 = por %p110, %p111
    %p113 = scmp.ne.s32.totalorder %s105, %s107
    %p114 = scmp.eq.s32.totalorder %s20, 1
    %p115 = por %p113, %p114
    %p116 = scmp.ne.s32.totalorder %s107, %s108
    %p117 = scmp.eq.s32.totalorder %s20, 0
    %p118 = por %p116, %p117
    %p119 = scmp.ne.s32.totalorder %s107, %s108
    %p120 = scmp.eq.s32.totalorder %s21, 1
    %p121 = por %p119, %p120
    %p123 = scmp.ne.s32.totalorder %s108, %s122
    %p124 = scmp.eq.s32.totalorder %s21, 0
    %p125 = por %p123, %p124
    %s127 = sadd.s32 %s126, 1
    %p130 = scmp.eq.s32.totalorder %s15, 1
    %p131 = scmp.ne.s32.totalorder %s126, %s128
    %p132 = scmp.eq.s32.totalorder %s15, 0
    %p133 = por %p131, %p132
    %p134 = scmp.ne.s32.totalorder %s126, %s128
    %p135 = scmp.eq.s32.totalorder %s20, 1
    %p136 = por %p134, %p135
    %p137 = scmp.ne.s32.totalorder %s128, %s129
    %p138 = scmp.eq.s32.totalorder %s20, 0
    %p139 = por %p137, %p138
    %p140 = scmp.ne.s32.totalorder %s128, %s129
    %p141 = scmp.eq.s32.totalorder %s21, 1
    %p142 = por %p140, %p141
    %p144 = scmp.ne.s32.totalorder %s129, %s143
    %p145 = scmp.eq.s32.totalorder %s21, 0
    %p146 = por %p144, %p145
    %s148 = sadd.s32 %s147, 1
    %p151 = scmp.eq.s32.totalorder %s15, 1
    %p152 = scmp.ne.s32.totalorder %s147, %s149
    %p153 = scmp.eq.s32.totalorder %s15, 0
    %p154 = por %p152, %p153
    %p155 = scmp.ne.s32.totalorder %s147, %s149
    %p156 = scmp.eq.s32.totalorder %s20, 1
    %p157 = por %p155, %p156
    %p158 = scmp.ne.s32.totalorder %s149, %s150
    %p159 = scmp.eq.s32.totalorder %s20, 0
    %p160 = por %p158, %p159
    %p161 = scmp.ne.s32.totalorder %s149, %s150
    %p162 = scmp.eq.s32.totalorder %s21, 1
    %p163 = por %p161, %p162
    %p165 = scmp.ne.s32.totalorder %s150, %s164
    %p166 = scmp.eq.s32.totalorder %s21, 0
    %p167 = por %p165, %p166
    %s169 = sadd.s32 %s168, 1
    %p172 = scmp.eq.s32.totalorder %s15, 1
    %p173 = scmp.ne.s32.totalorder %s168, %s170
    %p174 = scmp.eq.s32.totalorder %s15, 0
    %p175 = por %p173, %p174
    %p176 = scmp.ne.s32.totalorder %s168, %s170
    %p177 = scmp.eq.s32.totalorder %s20, 1
    %p178 = por %p176, %p177
    %p179 = scmp.ne.s32.totalorder %s170, %s171
    %p180 = scmp.eq.s32.totalorder %s20, 0
    %p181 = por %p179, %p180
    %p182 = scmp.ne.s32.totalorder %s170, %s171
    %p183 = scmp.eq.s32.totalorder %s21, 1
    %p184 = por %p182, %p183
    %p186 = scmp.ne.s32.totalorder %s171, %s185
    %p187 = scmp.eq.s32.totalorder %s21, 0
    %p188 = por %p186, %p187
    %s190 = sadd.s32 %s189, 1
    %p193 = scmp.eq.s32.totalorder %s15, 1
    %p194 = scmp.ne.s32.totalorder %s189, %s191
    %p195 = scmp.eq.s32.totalorder %s15, 0
    %p196 = por %p194, %p195
    %p197 = scmp.ne.s32.totalorder %s189, %s191
    %p198 = scmp.eq.s32.totalorder %s20, 1
    %p199 = por %p197, %p198
    %p200 = scmp.ne.s32.totalorder %s191, %s192
    %p201 = scmp.eq.s32.totalorder %s20, 0
    %p202 = por %p200, %p201
    %p203 = scmp.ne.s32.totalorder %s191, %s192
    %p204 = scmp.eq.s32.totalorder %s21, 1
    %p205 = por %p203, %p204
    %p207 = scmp.ne.s32.totalorder %s192, %s206
    %p208 = scmp.eq.s32.totalorder %s21, 0
    %p209 = por %p207, %p208
    %s211 = sadd.s32 %s210, 1
    %p214 = scmp.eq.s32.totalorder %s15, 1
    %p215 = scmp.ne.s32.totalorder %s210, %s212
    %p216 = scmp.eq.s32.totalorder %s15, 0
    %p217 = por %p215, %p216
    %p218 = scmp.ne.s32.totalorder %s210, %s212
    %p219 = scmp.eq.s32.totalorder %s20, 1
    %p220 = por %p218, %p219
    %p221 = scmp.ne.s32.totalorder %s212, %s213
    %p222 = scmp.eq.s32.totalorder %s20, 0
    %p223 = por %p221, %p222
    %p224 = scmp.ne.s32.totalorder %s212, %s213
    %p225 = scmp.eq.s32.totalorder %s21, 1
    %p226 = por %p224, %p225
    %p228 = scmp.ne.s32.totalorder %s213, %s227
    %p229 = scmp.eq.s32.totalorder %s21, 0
    %p230 = por %p228, %p229
    %s231 = ssub.s32 %s22, %s34
    %s232 = ssub.s32 %s23, %s30
    %s233 = sor.u32 %s231, %s232
    %p234 = scmp.eq.s32.totalorder %s233, 0
    %s236 = sadd.s32 %s235, 1
    %s237 = scalar_select %p234, %s235, %s236
    %p240 = pneg %p234
    %p241 = scmp.eq.s32.totalorder %s15, 1
    %p242 = por %p240, %p241
    %p243 = scmp.ne.s32.totalorder %s235, %s238
    %p244 = scmp.eq.s32.totalorder %s15, 0
    %p245 = por %p243, %p244
    %p246 = scmp.ne.s32.totalorder %s235, %s238
    %p247 = scmp.eq.s32.totalorder %s20, 1
    %p248 = por %p246, %p247
    %p249 = scmp.ne.s32.totalorder %s238, %s239
    %p250 = scmp.eq.s32.totalorder %s20, 0
    %p251 = por %p249, %p250
    %p252 = scmp.ne.s32.totalorder %s238, %s239
    %p253 = scmp.eq.s32.totalorder %s21, 1
    %p254 = por %p252, %p253
    %p256 = scmp.ne.s32.totalorder %s239, %s255
    %p257 = scmp.eq.s32.totalorder %s21, 0
    %p258 = por %p256, %p257
    %p259 = scmp.le.s32.totalorder 1, %s15
    %p260 = scmp.lt.s32.totalorder %s15, 3
    %p261 = pnand %p259, %p260
    %p262 = pneg %p261
    // Predicated region
    $region9: #{hourglass_pipeline_forward.2} parent=5 // pred_check
      _
    $region10: #{hourglass_pipeline_forward.2} parent=5 // pred_check_branch
      %264 = sbr.rel (%p261) target = $region12
    $region11: #{hourglass_pipeline_forward.2} parent=5 // pred_region
      %s265 = ssub.s32 %s15, 1
      // Predicated region
      $region13: #{hourglass_pipeline_forward.2} parent=11 // pred_check
        %p266 = pneg %p76
      $region14: #{hourglass_pipeline_forward.2} parent=11 // pred_check_branch
        %268 = sbr.rel (%p266) target = $region16
      $region15: #{hourglass_pipeline_forward.2} parent=11 // pred_region
        _
      $region16: #{hourglass_pipeline_forward.2} parent=11 // pred_fallthru
        _
      // Predicated region
      $region17: #{hourglass_pipeline_forward.2} parent=11 // pred_check
        %p269 = pneg %p97
      $region18: #{hourglass_pipeline_forward.2} parent=11 // pred_check_branch
        %271 = sbr.rel (%p269) target = $region20
      $region19: #{hourglass_pipeline_forward.2} parent=11 // pred_region
        _
      $region20: #{hourglass_pipeline_forward.2} parent=11 // pred_fallthru
        _
      // Predicated region
      $region21: #{hourglass_pipeline_forward.2} parent=11 // pred_check
        %p272 = pneg %p118
      $region22: #{hourglass_pipeline_forward.2} parent=11 // pred_check_branch
        %274 = sbr.rel (%p272) target = $region24
      $region23: #{hourglass_pipeline_forward.2} parent=11 // pred_region
        _
      $region24: #{hourglass_pipeline_forward.2} parent=11 // pred_fallthru
        _
      // Predicated region
      $region25: #{hourglass_pipeline_forward.2} parent=11 // pred_check
        %p275 = pneg %p139
      $region26: #{hourglass_pipeline_forward.2} parent=11 // pred_check_branch
        %277 = sbr.rel (%p275) target = $region28
      $region27: #{hourglass_pipeline_forward.2} parent=11 // pred_region
        _
      $region28: #{hourglass_pipeline_forward.2} parent=11 // pred_fallthru
        _
      // Predicated region
      $region29: #{hourglass_pipeline_forward.2} parent=11 // pred_check
        %p278 = pneg %p160
      $region30: #{hourglass_pipeline_forward.2} parent=11 // pred_check_branch
        %280 = sbr.rel (%p278) target = $region32
      $region31: #{hourglass_pipeline_forward.2} parent=11 // pred_region
        _
      $region32: #{hourglass_pipeline_forward.2} parent=11 // pred_fallthru
        _
      // Predicated region
      $region33: #{hourglass_pipeline_forward.2} parent=11 // pred_check
        %p281 = pneg %p181
      $region34: #{hourglass_pipeline_forward.2} parent=11 // pred_check_branch
        %283 = sbr.rel (%p281) target = $region36
      $region35: #{hourglass_pipeline_forward.2} parent=11 // pred_region
        _
      $region36: #{hourglass_pipeline_forward.2} parent=11 // pred_fallthru
        _
      // Predicated region
      $region37: #{hourglass_pipeline_forward.2} parent=11 // pred_check
        %p284 = pneg %p202
      $region38: #{hourglass_pipeline_forward.2} parent=11 // pred_check_branch
        %286 = sbr.rel (%p284) target = $region40
      $region39: #{hourglass_pipeline_forward.2} parent=11 // pred_region
        _
      $region40: #{hourglass_pipeline_forward.2} parent=11 // pred_fallthru
        _
      // Predicated region
      $region41: #{hourglass_pipeline_forward.2} parent=11 // pred_check
        %p287 = pneg %p223
      $region42: #{hourglass_pipeline_forward.2} parent=11 // pred_check_branch
        %289 = sbr.rel (%p287) target = $region44
      $region43: #{hourglass_pipeline_forward.2} parent=11 // pred_region
        _
      $region44: #{hourglass_pipeline_forward.2} parent=11 // pred_fallthru
        _
    $region12: #{hourglass_pipeline_forward.2} parent=5 // pred_fallthru
      _
    %p290 = scmp.lt.s32.totalorder %s15, 2
    // Predicated region
    $region45: #{hourglass_pipeline_forward.2} parent=5 // pred_check
      %p291 = pneg %p290
    $region46: #{hourglass_pipeline_forward.2} parent=5 // pred_check_branch
      %293 = sbr.rel (%p291) target = $region48
    $region47: #{hourglass_pipeline_forward.2} parent=5 // pred_region
      // Predicated region
      $region49: #{hourglass_pipeline_forward.2} parent=47 // pred_check
        %p294 = pneg %p49
      $region50: #{hourglass_pipeline_forward.2} parent=47 // pred_check_branch
        %296 = sbr.rel (%p294) target = $region52
      $region51: #{hourglass_pipeline_forward.2} parent=47 // pred_region
        %s297 = smul.u32 2, %s23
        %p298 = scmp.lt.s32.totalorder %s22, 1
        %s299 = scalar_select %p298, %s22, 1
        %p300 = scmp.lt.s32.totalorder %s297, 1
        %s301 = scalar_select %p300, %s297, 1
        %s302 = smul.addr %s299, 2
        %s303 = sadd.s32 %s301, %s302
        %s304 = smul.addr %s303, 4
        %s305 = scalar_lea.vmem %s0, %s304
        %s306 = smul.u32 2, %s23
      $region52: #{hourglass_pipeline_forward.2} parent=47 // pred_fallthru
        _
    $region48: #{hourglass_pipeline_forward.2} parent=5 // pred_fallthru
      _
    %p307 = scmp.le.s32.totalorder 1, %s15
    %p308 = scmp.lt.s32.totalorder %s15, 3
    %p309 = pnand %p307, %p308
    %p310 = pneg %p309
    // Predicated region
    $region53: #{hourglass_pipeline_forward.2} parent=5 // pred_check
      _
    $region54: #{hourglass_pipeline_forward.2} parent=5 // pred_check_branch
      %312 = sbr.rel (%p309) target = $region56
    $region55: #{hourglass_pipeline_forward.2} parent=5 // pred_region
      %s313 = ssub.s32 %s15, 1
      %s314 = smul.u32 2, %s25
      %p315 = scmp.lt.s32.totalorder %s24, 1
      %s316 = scalar_select %p315, %s24, 1
      %p317 = scmp.lt.s32.totalorder %s314, 1
      %s318 = scalar_select %p317, %s314, 1
      %s319 = smul.addr %s316, 2
      %s320 = sadd.s32 %s318, %s319
      %s321 = smul.addr %s320, 4
      %s322 = scalar_lea.vmem %s0, %s321
      %p323 = pneg %p55
      %p324 = pneg %p52
      %p325 = pneg %p76
      %p326 = pneg %p73
      %p327 = pneg %p97
      %p328 = pneg %p94
      %p329 = pneg %p118
      %p330 = pneg %p115
      %p331 = pneg %p139
      %p332 = pneg %p136
      %p333 = pneg %p160
      %p334 = pneg %p157
      %p335 = pneg %p181
      %p336 = pneg %p178
      %p337 = pneg %p202
      %p338 = pneg %p199
      %p339 = pneg %p223
      %p340 = pneg %p220
      %p341 = pneg %p251
      %p342 = pneg %p248
      %s343 = smul.u32 2, %s25
      %p344 = scmp.lt.s32.totalorder %s24, 1
      %s345 = scalar_select %p344, %s24, 1
      %p346 = scmp.lt.s32.totalorder %s343, 1
      %s347 = scalar_select %p346, %s343, 1
      %s348 = smul.addr %s345, 2
      %s349 = sadd.s32 %s347, %s348
      %s350 = smul.addr %s349, 4
      %s351 = scalar_lea.vmem %s9, %s350
      %s352 = smul.u32 2, %s25
      %p353 = scmp.lt.s32.totalorder %s24, 1
      %s354 = scalar_select %p353, %s24, 1
      %p355 = scmp.lt.s32.totalorder %s352, 1
      %s356 = scalar_select %p355, %s352, 1
      %s357 = smul.addr %s354, 2
      %s358 = sadd.s32 %s356, %s357
      %s359 = smul.addr %s358, 4
      %s360 = scalar_lea.vmem %s0, %s359
      %s361 = smul.u32 2, %s25
      %s362 = smul.u32 2, %s25
      %p363 = scmp.lt.s32.totalorder %s24, 1
      %s364 = scalar_select %p363, %s24, 1
      %p365 = scmp.lt.s32.totalorder %s362, 1
      %s366 = scalar_select %p365, %s362, 1
      %s367 = smul.addr %s364, 2
      %s368 = sadd.s32 %s366, %s367
      %s369 = smul.addr %s368, 4
      %s370 = scalar_lea.vmem %s9, %s369
      %s371 = smul.u32 2, %s25
      %v373 = vld [vmem:[%s360] sm:$0xff]
      %375 = vst [vmem:[#allocation1] ss:$2 sm:$0xff] %v373
      %v376 = vld.sshfl [vmem:[#allocation1] sm:$0xff pattern:$0x75316420]
      %v377 = vld.sshfl [vmem:[#allocation1 + $0x8] sm:$0xff pattern:$0x75316420]
      %v380 = vpack.c.bf16 %v376, %v376
      %v381 = vpack.c.bf16 %v377, %v377
      %v382 = vld [vmem:[%s1] sm:$0xf]
      %v383 = vld [vmem:[%s1 + $0x4] sm:$0xf]
      %v384 = vld [vmem:[%s1 + $0x8] sm:$0xf]
      %v385 = vld [vmem:[%s1 + $0xc] sm:$0xf]
      %v386 = vld [vmem:[%s2] sm:$0xff]
      %v387 = vld [vmem:[%s2 + $0x8] sm:$0xff]
      %v388 = vld [vmem:[%s2 + $0x10] sm:$0xff]
      %v389 = vld [vmem:[%s2 + $0x18] sm:$0xff]
      %391 = vset.pattern.permute.xlu0 0
      %392 = vperm.xlu0 %391, %v386
      %v393 = vpop.permute.xlu0 %392
      %396 = vset.pattern.permute.xlu0 0
      %397 = vperm.xlu0 %396, %v387
      %v398 = vpop.permute.xlu0 %397
      %401 = vset.pattern.permute.xlu0 0
      %402 = vperm.xlu0 %401, %v388
      %v403 = vpop.permute.xlu0 %402
      %406 = vset.pattern.permute.xlu0 0
      %407 = vperm.xlu0 %406, %v389
      %v408 = vpop.permute.xlu0 %407
      %v414 = vunpack.c.l.b16 %v382
      %v415 = vunpack.c.l.b16 %v383
      %v416 = vunpack.c.l.b16 %v384
      %v417 = vunpack.c.l.b16 %v385
      %v418 = vpack.c.b16 %v415, %v414
      %v419 = vpack.c.b16 %v417, %v416
      %vm420 = vcmask 31744
      %v422 = vsel %vm420, %v418, 0
      %v425 = vsel %vm420, %v419, 0
      %vm427 = vcmask 1041408
      %v429 = vsel %vm427, %v380, 0
      %v432 = vsel %vm427, %v381, 0
      %434 = vmatpush.bf16.msra.mxu0 0
      %435 = vmatpush.bf16.msra.mxu0 0
      %436 = vmatpush.bf16.msra.mxu0 0
      %437 = vmatpush.bf16.msra.mxu0 0
      %438 = vmatpush.bf16.msra.mxu0 0
      %439 = vmatpush.bf16.msra.mxu0 0
      %440 = vmatpush.bf16.msra.mxu0 0
      %441 = vmatpush.bf16.msra.mxu0 %v429
      %442 = vmatmul.bf16.gmra.mxu0 %v422
      %v443 = vpop.f32.mrf.mxu0
      %v444 = vadd.f32 %v393, %v443
      %v445 = vpop.f32.mrf.mxu0
      %v446 = vadd.f32 %v398, %v445
      %447 = vmatmul.bf16.gmra.mxu0 %v425
      %v448 = vpop.f32.mrf.mxu0
      %v449 = vadd.f32 %v403, %v448
      %v450 = vpop.f32.mrf.mxu0
      %v451 = vadd.f32 %v408, %v450
      %452 = vdwg.mxu0
      %453 = vmatpush.bf16.msra.mxu0 0
      %454 = vmatpush.bf16.msra.mxu0 0
      %455 = vmatpush.bf16.msra.mxu0 0
      %456 = vmatpush.bf16.msra.mxu0 0
      %457 = vmatpush.bf16.msra.mxu0 0
      %458 = vmatpush.bf16.msra.mxu0 0
      %459 = vmatpush.bf16.msra.mxu0 0
      %460 = vmatpush.bf16.msra.mxu0 %v432
      %461 = vmatmul.bf16.gmra.mxu0 %v422
      %v462 = vpop.f32.mrf.mxu0
      %v463 = vadd.f32 %v393, %v462
      %v464 = vpop.f32.mrf.mxu0
      %v465 = vadd.f32 %v398, %v464
      %466 = vmatmul.bf16.gmra.mxu0 %v425
      %v467 = vpop.f32.mrf.mxu0
      %v468 = vadd.f32 %v403, %v467
      %v469 = vpop.f32.mrf.mxu0
      %v470 = vadd.f32 %v408, %v469
      %471 = vdwg.mxu0
      %v472 = vmax.f32 %v444, 0.0
      %v473 = vmax.f32 %v463, 0.0
      %v474 = vmax.f32 %v446, 0.0
      %v475 = vmax.f32 %v465, 0.0
      %v476 = vmax.f32 %v449, 0.0
      %v477 = vmax.f32 %v468, 0.0
      %v478 = vmax.f32 %v451, 0.0
      %v479 = vmax.f32 %v470, 0.0
      %v480 = vpack.c.bf16 %v474, %v472
      %v481 = vpack.c.bf16 %v475, %v473
      %v482 = vpack.c.bf16 %v478, %v476
      %v483 = vpack.c.bf16 %v479, %v477
      %v484 = vld [vmem:[%s7] sm:$0xf]
      %v485 = vld [vmem:[%s7 + $0x4] sm:$0xf]
      %v486 = vld [vmem:[%s7 + $0x8] sm:$0xf]
      %v487 = vld [vmem:[%s7 + $0xc] sm:$0xf]
      %v488 = vld [vmem:[%s7 + $0x10] sm:$0xf]
      %v489 = vld [vmem:[%s7 + $0x14] sm:$0xf]
      %v490 = vld [vmem:[%s7 + $0x18] sm:$0xf]
      %v491 = vld [vmem:[%s7 + $0x1c] sm:$0xf]
      %v492 = vld [vmem:[%s7 + $0x20] sm:$0xf]
      %v493 = vld [vmem:[%s7 + $0x24] sm:$0xf]
      %v494 = vld [vmem:[%s7 + $0x28] sm:$0xf]
      %v495 = vld [vmem:[%s7 + $0x2c] sm:$0xf]
      %v496 = vld [vmem:[%s7 + $0x30] sm:$0xf]
      %v497 = vld [vmem:[%s7 + $0x34] sm:$0xf]
      %v498 = vld [vmem:[%s7 + $0x38] sm:$0xf]
      %v499 = vld [vmem:[%s7 + $0x3c] sm:$0xf]
      %v500 = vld [vmem:[%s7 + $0x40] sm:$0xf]
      %v501 = vld [vmem:[%s7 + $0x44] sm:$0xf]
      %v502 = vld [vmem:[%s7 + $0x48] sm:$0xf]
      %v503 = vld [vmem:[%s7 + $0x4c] sm:$0xf]
      %v504 = vld [vmem:[%s7 + $0x50] sm:$0xf]
      %v505 = vld [vmem:[%s7 + $0x54] sm:$0xf]
      %v506 = vld [vmem:[%s7 + $0x58] sm:$0xf]
      %v507 = vld [vmem:[%s7 + $0x5c] sm:$0xf]
      %v508 = vld [vmem:[%s7 + $0x60] sm:$0xf]
      %v509 = vld [vmem:[%s7 + $0x64] sm:$0xf]
      %v510 = vld [vmem:[%s7 + $0x68] sm:$0xf]
      %v511 = vld [vmem:[%s7 + $0x6c] sm:$0xf]
      %v512 = vld [vmem:[%s7 + $0x70] sm:$0xf]
      %v513 = vld [vmem:[%s7 + $0x74] sm:$0xf]
      %v514 = vld [vmem:[%s7 + $0x78] sm:$0xf]
      %v515 = vld [vmem:[%s7 + $0x7c] sm:$0xf]
      %v548 = vunpack.c.l.b16 %v484
      %v549 = vunpack.c.l.b16 %v485
      %v550 = vunpack.c.l.b16 %v486
      %v551 = vunpack.c.l.b16 %v487
      %v552 = vunpack.c.l.b16 %v488
      %v553 = vunpack.c.l.b16 %v489
      %v554 = vunpack.c.l.b16 %v490
      %v555 = vunpack.c.l.b16 %v491
      %v556 = vunpack.c.l.b16 %v492
      %v557 = vunpack.c.l.b16 %v493
      %v558 = vunpack.c.l.b16 %v494
      %v559 = vunpack.c.l.b16 %v495
      %v560 = vunpack.c.l.b16 %v496
      %v561 = vunpack.c.l.b16 %v497
      %v562 = vunpack.c.l.b16 %v498
      %v563 = vunpack.c.l.b16 %v499
      %v564 = vunpack.c.l.b16 %v500
      %v565 = vunpack.c.l.b16 %v501
      %v566 = vunpack.c.l.b16 %v502
      %v567 = vunpack.c.l.b16 %v503
      %v568 = vunpack.c.l.b16 %v504
      %v569 = vunpack.c.l.b16 %v505
      %v570 = vunpack.c.l.b16 %v506
      %v571 = vunpack.c.l.b16 %v507
      %v572 = vunpack.c.l.b16 %v508
      %v573 = vunpack.c.l.b16 %v509
      %v574 = vunpack.c.l.b16 %v510
      %v575 = vunpack.c.l.b16 %v511
      %v576 = vunpack.c.l.b16 %v512
      %v577 = vunpack.c.l.b16 %v513
      %v578 = vunpack.c.l.b16 %v514
      %v579 = vunpack.c.l.b16 %v515
      %v580 = vpack.c.b16 %v549, %v548
      %v581 = vpack.c.b16 %v551, %v550
      %v582 = vpack.c.b16 %v553, %v552
      %v583 = vpack.c.b16 %v555, %v554
      %v584 = vpack.c.b16 %v557, %v556
      %v585 = vpack.c.b16 %v559, %v558
      %v586 = vpack.c.b16 %v561, %v560
      %v587 = vpack.c.b16 %v563, %v562
      %v588 = vpack.c.b16 %v565, %v564
      %v589 = vpack.c.b16 %v567, %v566
      %v590 = vpack.c.b16 %v569, %v568
      %v591 = vpack.c.b16 %v571, %v570
      %v592 = vpack.c.b16 %v573, %v572
      %v593 = vpack.c.b16 %v575, %v574
      %v594 = vpack.c.b16 %v577, %v576
      %v595 = vpack.c.b16 %v579, %v578
      %612 = vmatpush.bf16.msra.mxu0 %v587
      %613 = vmatpush.bf16.msra.mxu0 %v586
      %614 = vmatpush.bf16.msra.mxu0 %v585
      %615 = vmatpush.bf16.msra.mxu0 %v584
      %616 = vmatpush.bf16.msra.mxu0 %v583
      %617 = vmatpush.bf16.msra.mxu0 %v582
      %618 = vmatpush.bf16.msra.mxu0 %v581
      %619 = vmatpush.bf16.msra.mxu0 %v580
      %620 = vmatmul.bf16.gmra.mxu0 %v480
      %v621 = vpop.f32.mrf.mxu0
      %v622 = vadd.f32 0.0, %v621
      %v623 = vpop.f32.mrf.mxu0
      %v624 = vadd.f32 0.0, %v623
      %625 = vmatmul.bf16.gmra.mxu0 %v482
      %v626 = vpop.f32.mrf.mxu0
      %v627 = vadd.f32 0.0, %v626
      %v628 = vpop.f32.mrf.mxu0
      %v629 = vadd.f32 0.0, %v628
      %630 = vdwg.mxu0
      %631 = vmatpush.bf16.msra.mxu0 %v595
      %632 = vmatpush.bf16.msra.mxu0 %v594
      %633 = vmatpush.bf16.msra.mxu0 %v593
      %634 = vmatpush.bf16.msra.mxu0 %v592
      %635 = vmatpush.bf16.msra.mxu0 %v591
      %636 = vmatpush.bf16.msra.mxu0 %v590
      %637 = vmatpush.bf16.msra.mxu0 %v589
      %638 = vmatpush.bf16.msra.mxu0 %v588
      %639 = vmatmul.bf16.gmra.mxu0 %v481
      %v640 = vpop.f32.mrf.mxu0
      %v641 = vadd.f32 %v622, %v640
      %v642 = vpop.f32.mrf.mxu0
      %v643 = vadd.f32 %v624, %v642
      %644 = vmatmul.bf16.gmra.mxu0 %v483
      %v645 = vpop.f32.mrf.mxu0
      %v646 = vadd.f32 %v627, %v645
      %v647 = vpop.f32.mrf.mxu0
      %v648 = vadd.f32 %v629, %v647
      %649 = vdwg.mxu0
      %v650 = vpack.c.bf16 %v643, %v641
      %v651 = vpack.c.bf16 %v648, %v646
      %v652 = vld [vmem:[%s3] sm:$0xf]
      %v653 = vld [vmem:[%s3 + $0x4] sm:$0xf]
      %v654 = vld [vmem:[%s3 + $0x8] sm:$0xf]
      %v655 = vld [vmem:[%s3 + $0xc] sm:$0xf]
      %v656 = vld [vmem:[%s4] sm:$0xff]
      %v657 = vld [vmem:[%s4 + $0x8] sm:$0xff]
      %v658 = vld [vmem:[%s4 + $0x10] sm:$0xff]
      %v659 = vld [vmem:[%s4 + $0x18] sm:$0xff]
      %661 = vset.pattern.permute.xlu0 0
      %662 = vperm.xlu0 %661, %v656
      %v663 = vpop.permute.xlu0 %662
      %666 = vset.pattern.permute.xlu0 0
      %667 = vperm.xlu0 %666, %v657
      %v668 = vpop.permute.xlu0 %667
      %671 = vset.pattern.permute.xlu0 0
      %672 = vperm.xlu0 %671, %v658
      %v673 = vpop.permute.xlu0 %672
      %676 = vset.pattern.permute.xlu0 0
      %677 = vperm.xlu0 %676, %v659
      %v678 = vpop.permute.xlu0 %677
      %v684 = vunpack.c.l.b16 %v652
      %v685 = vunpack.c.l.b16 %v653
      %v686 = vunpack.c.l.b16 %v654
      %v687 = vunpack.c.l.b16 %v655
      %v688 = vpack.c.b16 %v685, %v684
      %v689 = vpack.c.b16 %v687, %v686
      %vm690 = vcmask 261120
      %v692 = vsel %vm690, %v688, 0
      %v695 = vsel %vm690, %v689, 0
      %697 = vmatpush.bf16.msra.mxu0 0
      %698 = vmatpush.bf16.msra.mxu0 0
      %699 = vmatpush.bf16.msra.mxu0 0
      %700 = vmatpush.bf16.msra.mxu0 0
      %701 = vmatpush.bf16.msra.mxu0 0
      %702 = vmatpush.bf16.msra.mxu0 0
      %703 = vmatpush.bf16.msra.mxu0 %v651
      %704 = vmatpush.bf16.msra.mxu0 %v650
      %705 = vmatmul.bf16.gmra.mxu0 %v692
      %v706 = vpop.f32.mrf.mxu0
      %v707 = vadd.f32 %v663, %v706
      %v708 = vpop.f32.mrf.mxu0
      %v709 = vadd.f32 %v668, %v708
      %710 = vmatmul.bf16.gmra.mxu0 %v695
      %v711 = vpop.f32.mrf.mxu0
      %v712 = vadd.f32 %v673, %v711
      %v713 = vpop.f32.mrf.mxu0
      %v714 = vadd.f32 %v678, %v713
      %715 = vdwg.mxu0
      %v716 = vmax.f32 %v707, 0.0
      %v717 = vmax.f32 %v709, 0.0
      %v718 = vmax.f32 %v712, 0.0
      %v719 = vmax.f32 %v714, 0.0
      %v720 = vpack.c.bf16 %v717, %v716
      %v721 = vpack.c.bf16 %v719, %v718
      %v722 = vld [vmem:[%s8] sm:$0xff]
      %v723 = vld [vmem:[%s8 + $0x8] sm:$0xff]
      %v724 = vld [vmem:[%s8 + $0x10] sm:$0xff]
      %v725 = vld [vmem:[%s8 + $0x18] sm:$0xff]
      %v726 = vld [vmem:[%s8 + $0x20] sm:$0xff]
      %v727 = vld [vmem:[%s8 + $0x28] sm:$0xff]
      %v728 = vld [vmem:[%s8 + $0x30] sm:$0xff]
      %v729 = vld [vmem:[%s8 + $0x38] sm:$0xff]
      %v738 = vunpack.c.l.b16 %v722
      %v739 = vunpack.c.h.b16 %v722
      %v740 = vunpack.c.l.b16 %v723
      %v741 = vunpack.c.h.b16 %v723
      %v742 = vunpack.c.l.b16 %v724
      %v743 = vunpack.c.h.b16 %v724
      %v744 = vunpack.c.l.b16 %v725
      %v745 = vunpack.c.h.b16 %v725
      %v746 = vunpack.c.l.b16 %v726
      %v747 = vunpack.c.h.b16 %v726
      %v748 = vunpack.c.l.b16 %v727
      %v749 = vunpack.c.h.b16 %v727
      %v750 = vunpack.c.l.b16 %v728
      %v751 = vunpack.c.h.b16 %v728
      %v752 = vunpack.c.l.b16 %v729
      %v753 = vunpack.c.h.b16 %v729
      %v754 = vpack.c.b16 %v740, %v738
      %v755 = vpack.c.b16 %v741, %v739
      %v756 = vpack.c.b16 %v744, %v742
      %v757 = vpack.c.b16 %v745, %v743
      %v758 = vpack.c.b16 %v748, %v746
      %v759 = vpack.c.b16 %v749, %v747
      %v760 = vpack.c.b16 %v752, %v750
      %v761 = vpack.c.b16 %v753, %v751
      %vm770 = vcmask 523264
      %v772 = vsel %vm770, %v720, 0
      %v775 = vsel %vm770, %v721, 0
      %777 = vmatpush.bf16.msra.mxu0 0
      %778 = vmatpush.bf16.msra.mxu0 0
      %779 = vmatpush.bf16.msra.mxu0 0
      %780 = vmatpush.bf16.msra.mxu0 0
      %781 = vmatpush.bf16.msra.mxu0 %v760
      %782 = vmatpush.bf16.msra.mxu0 %v758
      %783 = vmatpush.bf16.msra.mxu0 %v756
      %784 = vmatpush.bf16.msra.mxu0 %v754
      %785 = vmatmul.bf16.gmra.mxu0 %v772
      %v786 = vpop.f32.mrf.mxu0
      %v787 = vadd.f32 %v472, %v786
      %v788 = vpop.f32.mrf.mxu0
      %v789 = vadd.f32 %v474, %v788
      %790 = vmatmul.bf16.gmra.mxu0 %v775
      %v791 = vpop.f32.mrf.mxu0
      %v792 = vadd.f32 %v476, %v791
      %v793 = vpop.f32.mrf.mxu0
      %v794 = vadd.f32 %v478, %v793
      %795 = vdwg.mxu0
      %796 = vmatpush.bf16.msra.mxu0 0
      %797 = vmatpush.bf16.msra.mxu0 0
      %798 = vmatpush.bf16.msra.mxu0 0
      %799 = vmatpush.bf16.msra.mxu0 0
      %800 = vmatpush.bf16.msra.mxu0 %v761
      %801 = vmatpush.bf16.msra.mxu0 %v759
      %802 = vmatpush.bf16.msra.mxu0 %v757
      %803 = vmatpush.bf16.msra.mxu0 %v755
      %804 = vmatmul.bf16.gmra.mxu0 %v772
      %v805 = vpop.f32.mrf.mxu0
      %v806 = vadd.f32 %v473, %v805
      %v807 = vpop.f32.mrf.mxu0
      %v808 = vadd.f32 %v475, %v807
      %809 = vmatmul.bf16.gmra.mxu0 %v775
      %v810 = vpop.f32.mrf.mxu0
      %v811 = vadd.f32 %v477, %v810
      %v812 = vpop.f32.mrf.mxu0
      %v813 = vadd.f32 %v479, %v812
      %814 = vdwg.mxu0
      %v815 = vpack.c.bf16 %v789, %v787
      %v816 = vpack.c.bf16 %v808, %v806
      %v817 = vpack.c.bf16 %v794, %v792
      %v818 = vpack.c.bf16 %v813, %v811
      %v819 = vld [vmem:[%s5] sm:$0x3]
      %v820 = vld [vmem:[%s6] sm:$0xf]
      %822 = vset.pattern.permute.xlu0 0
      %823 = vperm.xlu0 %822, %v820
      %v824 = vpop.permute.xlu0 %823
      %v827 = vsel %vm690, %v819, 0
      %829 = vmatpush.bf16.msra.mxu0 0
      %830 = vmatpush.bf16.msra.mxu0 0
      %831 = vmatpush.bf16.msra.mxu0 0
      %832 = vmatpush.bf16.msra.mxu0 0
      %833 = vmatpush.bf16.msra.mxu0 0
      %834 = vmatpush.bf16.msra.mxu0 0
      %835 = vmatpush.bf16.msra.mxu0 %v817
      %836 = vmatpush.bf16.msra.mxu0 %v815
      %837 = vmatmul.bf16.gmra.mxu0 %v827
      %v838 = vpop.f32.mrf.mxu0
      %v839 = vadd.f32 %v824, %v838
      %v840 = vpop.f32.mrf.mxu0
      %841 = vdwg.mxu0
      %842 = vmatpush.bf16.msra.mxu0 0
      %843 = vmatpush.bf16.msra.mxu0 0
      %844 = vmatpush.bf16.msra.mxu0 0
      %845 = vmatpush.bf16.msra.mxu0 0
      %846 = vmatpush.bf16.msra.mxu0 0
      %847 = vmatpush.bf16.msra.mxu0 0
      %848 = vmatpush.bf16.msra.mxu0 %v818
      %849 = vmatpush.bf16.msra.mxu0 %v816
      %850 = vmatmul.bf16.gmra.mxu0 %v827
      %v851 = vpop.f32.mrf.mxu0
      %v852 = vadd.f32 %v824, %v851
      %v853 = vpop.f32.mrf.mxu0
      %854 = vdwg.mxu0
      %v857 = vrot.slane %v852, 4
      %vm858 = vcmask 1043456
      %v859 = vsel %vm858, %v839, %v857
      %861 = vst [vmem:[%s370] sm:$0xff] %v859
      %s862 = smul.u32 2, %s25
      %p863 = scmp.lt.s32.totalorder %s24, 1
      %s864 = scalar_select %p863, %s24, 1
      %p865 = scmp.lt.s32.totalorder %s862, 1
      %s866 = scalar_select %p865, %s862, 1
      %s867 = smul.addr %s864, 2
      %s868 = sadd.s32 %s866, %s867
      %s869 = smul.addr %s868, 4
      %s870 = scalar_lea.vmem %s9, %s869
      // Predicated region
      $region57: #{hourglass_pipeline_forward.2} parent=55 // pred_check
        %p871 = pneg %p248
      $region58: #{hourglass_pipeline_forward.2} parent=55 // pred_check_branch
        %873 = sbr.rel (%p871) target = $region60
      $region59: #{hourglass_pipeline_forward.2} parent=55 // pred_region
        %s874 = smul.u32 2, %s25
      $region60: #{hourglass_pipeline_forward.2} parent=55 // pred_fallthru
        _
    $region56: #{hourglass_pipeline_forward.2} parent=5 // pred_fallthru
      _
    %p875 = scmp.le.s32.totalorder 2, %s15
    // Predicated region
    $region61: #{hourglass_pipeline_forward.2} parent=5 // pred_check
      %p876 = pneg %p875
    $region62: #{hourglass_pipeline_forward.2} parent=5 // pred_check_branch
      %878 = sbr.rel (%p876) target = $region64
    $region63: #{hourglass_pipeline_forward.2} parent=5 // pred_region
      %s879 = ssub.s32 %s15, 2
      // Predicated region
      $region65: #{hourglass_pipeline_forward.2} parent=63 // pred_check
        %p880 = pneg %p254
      $region66: #{hourglass_pipeline_forward.2} parent=63 // pred_check_branch
        %882 = sbr.rel (%p880) target = $region68
      $region67: #{hourglass_pipeline_forward.2} parent=63 // pred_region
        %s883 = smul.u32 2, %s27
        %p884 = scmp.lt.s32.totalorder %s26, 1
        %s885 = scalar_select %p884, %s26, 1
        %p886 = scmp.lt.s32.totalorder %s883, 1
        %s887 = scalar_select %p886, %s883, 1
        %s888 = smul.addr %s885, 2
        %s889 = sadd.s32 %s887, %s888
        %s890 = smul.addr %s889, 4
        %s891 = scalar_lea.vmem %s9, %s890
      $region68: #{hourglass_pipeline_forward.2} parent=63 // pred_fallthru
        _
    $region64: #{hourglass_pipeline_forward.2} parent=5 // pred_fallthru
      _
  $region6: #{hourglass_pipeline_forward.2} parent=0 // loop_footer
    %s19 = sadd.s32 1, %s15
  $region7: #{hourglass_pipeline_forward.2} parent=0 // loop_footer_branch
    %14 = sbr.rel target = $region3
  $region8: #{hourglass_pipeline_forward.2} parent=0 // loop_exit
    _

</llo_original>
